<compile_context>
chip_gen: v7x
topology: tpu7x:2x2x1
jax: 0.10.0
libtpu: 0.0.40
codegen_flags: <defaults>
</compile_context>

<pallas_src>
import jax
import jax.numpy as jnp
from jax import lax
from jax.experimental import pallas as pl
from jax.experimental.pallas import tpu as pltpu


# ---------------------------------------------------------------------------
# Pallas kernel.
# grid = (T//tm [parallel], E_total [arbitrary], H//th [arbitrary])
# ---------------------------------------------------------------------------
def _moe_ffn_kernel(meta_ref, x_ref, w13_ref, w2_ref, gw_ref, o_ref, gate_ref):
    e = pl.program_id(1)
    h = pl.program_id(2)
    num_active = meta_ref[0]            # experts with >=1 routed token

    @pl.when((e == 0) & (h == 0))
    def _init():
        o_ref[...] = jnp.zeros_like(o_ref)

    @pl.when(e < num_active)            # skip MXU/VPU work for empty experts
    def _compute():
        # Gate column is identical across all H steps: extract once per (t, e).
        @pl.when(h == 0)
        def _gate():
            lane = lax.broadcasted_iota(jnp.int32, gw_ref.shape, 1)
            gate_ref[...] = jnp.sum(jnp.where(lane == e, gw_ref[...], 0.0),
                                    axis=1, keepdims=True)            # (tm, 1) f32

        th = w2_ref.shape[1]
        x = x_ref[...]                                                 # (tm, D) bf16
        # Fused w1|w3 slab: a single MXU pass yields both SwiGLU operands.
        hg = jnp.dot(x, w13_ref[0], preferred_element_type=jnp.float32)  # (tm, 2*th)
        hpre, gpre = hg[:, :th], hg[:, th:]
        # SwiGLU in fp32; the divide goes to the EUP via approximate reciprocal.
        silu = hpre * pl.reciprocal(1.0 + jnp.exp(-hpre), approx=True)
        act = (silu * gpre).astype(jnp.bfloat16)
        part = jnp.dot(act, w2_ref[0], preferred_element_type=jnp.float32)  # (tm, D)
        o_ref[...] += gate_ref[...] * part


# ---------------------------------------------------------------------------
# Per-generation VMEM budget and tile selection.
# ---------------------------------------------------------------------------
def _vmem_budget():
    try:
        cap = pltpu.get_tpu_info().vmem_capacity_bytes
    except Exception:
        cap = 64 * 1024 * 1024          # conservative fallback (v7x per-TC size)
    return int(cap * 0.8)               # ~102 MiB v5e/v6e, ~51 MiB v7x


def _choose_tiles(T, D, H, E, budget):
    """Largest (token_tile, hidden_tile) whose double-buffered blocks fit."""
    def bytes_needed(tm, th):
        per_buf = (D * (2 * th) * 2      # w13 block (bf16)
                   + th * D * 2          # w2 block (bf16)
                   + tm * D * 2          # x block (bf16)
                   + tm * max(E, 128) * 4  # gate block (f32, lane-padded)
                   + tm * D * 4)         # out block (f32, accumulated in place)
        return 2 * per_buf + (2 << 20)   # double-buffered + scratch/semaphore slack

    t_cap = max(16, ((T + 15) // 16) * 16)          # >=16 rows for bf16 packing
    th_cands = [H] + [c for c in (1024, 512, 256, 128) if c < H and H % c == 0]
    for tm in (512, 256, 128, 64, 32, 16):           # prefer big token tiles
        if tm > t_cap:
            continue
        for th in th_cands:                           # then big hidden tiles
            if bytes_needed(tm, th) <= budget:
                return tm, th
    return 16, th_cands[-1]


# ---------------------------------------------------------------------------
# pallas_call wrapper.
# ---------------------------------------------------------------------------
def moe_ffn_pallas(meta, x_bf16, w13, w2, gate_ordered, *, tm, th, vmem_limit):
    """meta: (E+1,) i32 [num_active, expert_order...]; x: (T, D) bf16;
    w13: (E, D, 2H) bf16; w2: (E, H, D) bf16; gate_ordered: (T, E) f32."""
    T, D = x_bf16.shape
    E = w13.shape[0]
    H = w2.shape[1]
    assert T % tm == 0 and H % th == 0
    nt, nh = T // tm, H // th

    cost = pl.CostEstimate(
        flops=6 * T * D * H * E,
        transcendentals=T * H * E,
        bytes_accessed=nt * 3 * E * D * H * 2 + T * D * (2 + 4) + T * E * 4,
    )

    # index_map args: (t, e, h, meta_ref).  Idle (padded) expert steps are
    # pinned to the LAST block fetched for the last active expert (h = nh-1),
    # so no extra weight DMA is issued on the active->idle transition.
    def w13_map(t, e, h, meta):
        return (meta[1 + e], 0, jnp.where(e < meta[0], h, nh - 1))

    def w2_map(t, e, h, meta):
        return (meta[1 + e], jnp.where(e < meta[0], h, nh - 1), 0)

    grid_spec = pltpu.PrefetchScalarGridSpec(
        num_scalar_prefetch=1,
        grid=(nt, E, nh),
        in_specs=[
            pl.BlockSpec((tm, D), lambda t, e, h, meta: (t, 0)),      # x (per t-tile)
            pl.BlockSpec((1, D, 2 * th), w13_map),                    # fused w1|w3
            pl.BlockSpec((1, th, D), w2_map),                         # w2 tile
            pl.BlockSpec((tm, E), lambda t, e, h, meta: (t, 0)),      # gates (lane-dense)
        ],
        out_specs=pl.BlockSpec((tm, D), lambda t, e, h, meta: (t, 0)),
        scratch_shapes=[pltpu.VMEM((tm, 1), jnp.float32)],            # hoisted gate
    )
    # TODO(synk): sweep pipeline_mode=pl.Buffered(3) on the weight specs where
    # VMEM headroom allows (decode DMA-turnaround hiding).

    return pl.pallas_call(
        _moe_ffn_kernel,
        out_shape=jax.ShapeDtypeStruct((T, D), jnp.float32),
        grid_spec=grid_spec,
        compiler_params=pltpu.CompilerParams(
            dimension_semantics=("parallel", "arbitrary", "arbitrary"),
            vmem_limit_bytes=vmem_limit),
        cost_estimate=cost,
    )(meta, x_bf16, w13, w2, gate_ordered)


# ---------------------------------------------------------------------------
# Glue: gating network (softmax + top-k), active-expert ordering, dense gates.
# ---------------------------------------------------------------------------
def moe_gate(x_flat, gate_weight, top_k, norm_topk_prob):
    logits = x_flat @ gate_weight.T                       # (T, E_routed), f32
    scores = jax.nn.softmax(logits, axis=-1)
    topk_w, topk_idx = jax.lax.top_k(scores, top_k)
    if top_k > 1 and norm_topk_prob:
        topk_w = topk_w / (topk_w.sum(axis=-1, keepdims=True) + 1e-20)
    return topk_idx, topk_w


def moe_feedforward(x, params, *, top_k, norm_topk_prob, has_shared):
    """x: (B, S, D) f32 -> (B, S, D) f32.  Matches MOEFeedForward.forward (eval)."""
    B, S, D = x.shape
    T = B * S
    x_flat = x.reshape(T, D)

    topk_idx, topk_w = moe_gate(x_flat, params["gate_w"], top_k, norm_topk_prob)
    n_routed = params["gate_w"].shape[0]

    # Dense per-(token, expert) gate weights in original expert order.
    dense_w = jnp.zeros((T, n_routed), jnp.float32)
    dense_w = dense_w.at[jnp.arange(T)[:, None], topk_idx].add(topk_w)
    if has_shared:
        gate_full = jnp.concatenate([dense_w, jnp.ones((T, 1), jnp.float32)], axis=1)
    else:
        gate_full = dense_w
    e_total = gate_full.shape[1]

    # Active-expert bookkeeping (routed experts with >=1 token; shared always).
    counts = jnp.zeros((n_routed,), jnp.int32).at[topk_idx.reshape(-1)].add(1)
    if has_shared:
        active = jnp.concatenate([counts > 0, jnp.ones((1,), dtype=jnp.bool_)])
    else:
        active = counts > 0
    num_active = jnp.sum(active.astype(jnp.int32))
    order = jnp.argsort(jnp.logical_not(active).astype(jnp.int32),
                        stable=True).astype(jnp.int32)
    pos = jnp.arange(e_total, dtype=jnp.int32)
    last_active = order[jnp.maximum(num_active - 1, 0)]
    order = jnp.where(pos < num_active, order, last_active)   # pad with repeats
    meta = jnp.concatenate([num_active.reshape(1), order]).astype(jnp.int32)

    # Gate columns re-ordered to grid-step order; padded columns zeroed.
    gate_ordered = (jnp.take(gate_full, order, axis=1)
                    * (pos < num_active)[None, :].astype(jnp.float32))

    # Per-generation tile/VMEM sizing and ragged-T padding (no asserts).
    H = params["w2"].shape[1]
    budget = _vmem_budget()
    tm, th = _choose_tiles(T, D, H, e_total, budget)
    T_pad = ((T + tm - 1) // tm) * tm
    xb = x_flat.astype(jnp.bfloat16)
    if T_pad != T:
        xb = jnp.pad(xb, ((0, T_pad - T), (0, 0)))
        gate_ordered = jnp.pad(gate_ordered, ((0, T_pad - T), (0, 0)))

    y_pad = moe_ffn_pallas(meta, xb, params["w13"], params["w2"], gate_ordered,
                           tm=tm, th=th, vmem_limit=budget)
    y_flat = y_pad[:T].astype(x.dtype)
    return y_flat.reshape(B, S, D)

# TODO(synk): full grouped-matmul (token sort + ragged per-expert tiles via
# data-dependent x/out index_maps) would further cut prefill FLOPs by
# ~E_active/top_k; the active-expert skip above covers empty experts only.
# TODO(synk): v7x decode (nt == 1) leaves the second TensorCore idle; split the
# expert reduction into 2 parallel groups with per-group partial outputs.
# TODO(synk): training-path aux_loss (load-balancing loss) is not part of the
# inference forward output and is not implemented.


# ---------------------------------------------------------------------------
# Pure-JAX reference (same bf16 operand rounding, fp32 accumulation).
# ---------------------------------------------------------------------------
def moe_reference(x, params, *, top_k, norm_topk_prob, has_shared):
    B, S, D = x.shape
    T = B * S
    x_flat = x.reshape(T, D)
    topk_idx, topk_w = moe_gate(x_flat, params["gate_w"], top_k, norm_topk_prob)
    n_routed = params["gate_w"].shape[0]
    dense_w = jnp.zeros((T, n_routed), jnp.float32)
    dense_w = dense_w.at[jnp.arange(T)[:, None], topk_idx].add(topk_w)
    if has_shared:
        dense_w = jnp.concatenate([dense_w, jnp.ones((T, 1), jnp.float32)], axis=1)
    H = params["w2"].shape[1]
    xb = x_flat.astype(jnp.bfloat16)
    out = jnp.zeros((T, D), jnp.float32)
    for e in range(params["w13"].shape[0]):
        hg = jnp.dot(xb, params["w13"][e], preferred_element_type=jnp.float32)
        h, g = hg[:, :H], hg[:, H:]
        act = (h * jax.nn.sigmoid(h) * g).astype(jnp.bfloat16)
        out = out + dense_w[:, e:e + 1] * jnp.dot(
            act, params["w2"][e], preferred_element_type=jnp.float32)
    return out.reshape(B, S, D)


# ---------------------------------------------------------------------------
# Main
# ---------------------------------------------------------------------------
if __name__ == "__main__":
    # Small config consistent with LMConfig semantics.
    dim = 32
    multiple_of = 64
    hidden_dim = multiple_of * ((int(2 * (4 * dim) / 3) + multiple_of - 1) // multiple_of)  # 128
    n_routed_experts = 4
    num_experts_per_tok = 2
    norm_topk_prob = True
    n_shared_experts = 1          # "is not None" -> shared expert active
    batch, seq = 2, 8

    n_total_experts = n_routed_experts + 1  # +1 shared expert

    key = jax.random.PRNGKey(0)
    k_x, k_w1, k_w3, k_w2, k_g = jax.random.split(key, 5)

    scale_in = 1.0 / jnp.sqrt(dim)
    scale_h = 1.0 / jnp.sqrt(hidden_dim)
    # Expert weights stored in bf16 (what the kernel consumes); gate stays f32.
    w1 = (jax.random.normal(k_w1, (n_total_experts, dim, hidden_dim), jnp.float32)
          * scale_in).astype(jnp.bfloat16)
    w3 = (jax.random.normal(k_w3, (n_total_experts, dim, hidden_dim), jnp.float32)
          * scale_in).astype(jnp.bfloat16)
    params = {
        "w13": jnp.concatenate([w1, w3], axis=2),            # (E, D, 2H) fused slab
        "w2": (jax.random.normal(k_w2, (n_total_experts, hidden_dim, dim), jnp.float32)
               * scale_h).astype(jnp.bfloat16),
        "gate_w": jax.random.normal(k_g, (n_routed_experts, dim), jnp.float32) * scale_in,
    }

    x = jax.random.normal(k_x, (batch, seq, dim), jnp.float32)

    y = moe_feedforward(x, params, top_k=num_experts_per_tok,
                        norm_topk_prob=norm_topk_prob, has_shared=True)
    y = jax.block_until_ready(y)

    y_ref = moe_reference(x, params, top_k=num_experts_per_tok,
                          norm_topk_prob=norm_topk_prob, has_shared=True)

    assert y.shape == x.shape
    assert jnp.allclose(y, y_ref, rtol=2e-2, atol=2e-2), "mismatch vs reference"

    print("KERNEL_OK")
</pallas_src>

<mosaic_0001>
module attributes {stable_mosaic.version = 11 : i64} {
  func.func @_moe_ffn_kernel(%arg0: i32, %arg1: i32, %arg2: i32, %arg3: memref<6xi32, #tpu.memory_space<smem>>, %arg4: memref<16x32xbf16, #tpu.memory_space<vmem>>, %arg5: memref<1x32x256xbf16, #tpu.memory_space<vmem>>, %arg6: memref<1x128x32xbf16, #tpu.memory_space<vmem>>, %arg7: memref<16x5xf32, #tpu.memory_space<vmem>>, %arg8: memref<16x32xf32, #tpu.memory_space<vmem>>, %arg9: memref<16x1xf32, #tpu.memory_space<vmem>>) attributes {dimension_semantics = [#tpu.dimension_semantics<parallel>, #tpu.dimension_semantics<arbitrary>, #tpu.dimension_semantics<arbitrary>], iteration_bounds = array<i64: 1, 5, 1>, scalar_prefetch = 1 : i64, scratch_operands = 1 : i64, tpu.core_type = #tpu.core_type<tc>, window_params = [{transform_indices = @transform_0, window_bounds = array<i64: 16, 32>}, {transform_indices = @transform_1, window_bounds = array<i64: 1, 32, 256>}, {transform_indices = @transform_2, window_bounds = array<i64: 1, 128, 32>}, {transform_indices = @transform_3, window_bounds = array<i64: 16, 5>}, {transform_indices = @transform_4, window_bounds = array<i64: 16, 32>}]} {
    %c0 = arith.constant 0 : index
    %0 = memref.load %arg3[%c0] : memref<6xi32, #tpu.memory_space<smem>>
    %c0_i32 = arith.constant 0 : i32
    %1 = arith.cmpi eq, %arg1, %c0_i32 : i32
    %c0_i32_0 = arith.constant 0 : i32
    %2 = arith.cmpi eq, %arg2, %c0_i32_0 : i32
    %3 = arith.andi %1, %2 : i1
    %4 = arith.extui %3 : i1 to i32
    %c0_i32_1 = arith.constant 0 : i32
    %5 = arith.cmpi ne, %4, %c0_i32_1 : i32
    scf.if %5 {
      %cst = arith.constant 0.000000e+00 : f32
      %9 = vector.broadcast %cst : f32 to vector<16x32xf32>
      %c0_3 = arith.constant 0 : index
      %c0_4 = arith.constant 0 : index
      %10 = vector.load %arg8[%c0_3, %c0_4] : memref<16x32xf32, #tpu.memory_space<vmem>>, vector<16x32xf32>
      tpu.vector_store %arg8[%c0_3, %c0_4], %9 {strides = array<i32>} : memref<16x32xf32, #tpu.memory_space<vmem>>, vector<16x32xf32>,
    } else {
    }
    %6 = arith.cmpi slt, %arg1, %0 : i32
    %7 = arith.extui %6 : i1 to i32
    %c0_i32_2 = arith.constant 0 : i32
    %8 = arith.cmpi ne, %7, %c0_i32_2 : i32
    scf.if %8 {
      %c0_i32_3 = arith.constant 0 : i32
      %9 = arith.cmpi eq, %arg2, %c0_i32_3 : i32
      %10 = arith.extui %9 : i1 to i32
      %c0_i32_4 = arith.constant 0 : i32
      %11 = arith.cmpi ne, %10, %c0_i32_4 : i32
      scf.if %11 {
        %36 = tpu.iota {dimensions = array<i32: 1>} : vector<16x5xi32>
        %37 = vector.broadcast %arg1 : i32 to vector<16x5xi32>
        %38 = arith.cmpi eq, %36, %37 : vector<16x5xi32>
        %c0_22 = arith.constant 0 : index
        %c0_23 = arith.constant 0 : index
        %39 = vector.load %arg7[%c0_22, %c0_23] : memref<16x5xf32, #tpu.memory_space<vmem>>, vector<16x5xf32>
        %cst_24 = arith.constant 0.000000e+00 : f32
        %40 = vector.broadcast %cst_24 : f32 to vector<16x5xf32>
        %41 = arith.select %38, %39, %40 : vector<16x5xi1>, vector<16x5xf32>
        %cst_25 = arith.constant dense<0.000000e+00> : vector<16xf32>
        %42 = vector.multi_reduction <add>, %41, %cst_25 [1] : vector<16x5xf32> to vector<16xf32>
        %43 = vector.shape_cast %42 : vector<16xf32> to vector<16x1xf32>
        %c0_26 = arith.constant 0 : index
        %c0_27 = arith.constant 0 : index
        %44 = vector.load %arg9[%c0_26, %c0_27] : memref<16x1xf32, #tpu.memory_space<vmem>>, vector<16x1xf32>
        tpu.vector_store %arg9[%c0_26, %c0_27], %43 {strides = array<i32>} : memref<16x1xf32, #tpu.memory_space<vmem>>, vector<16x1xf32>,
      } else {
      }
      %c0_5 = arith.constant 0 : index
      %c0_6 = arith.constant 0 : index
      %12 = vector.load %arg4[%c0_5, %c0_6] : memref<16x32xbf16, #tpu.memory_space<vmem>>, vector<16x32xbf16>
      %c0_7 = arith.constant 0 : index
      %c0_8 = arith.constant 0 : index
      %c0_9 = arith.constant 0 : index
      %13 = vector.load %arg5[%c0_7, %c0_8, %c0_9] : memref<1x32x256xbf16, #tpu.memory_space<vmem>>, vector<1x32x256xbf16>
      %14 = vector.shape_cast %13 : vector<1x32x256xbf16> to vector<32x256xbf16>
      %cst = arith.constant dense<0.000000e+00> : vector<16x256xf32>
      %15 = tpu.matmul %12, %14, %cst {dimension_numbers = #tpu.dot_dimension_numbers<[1], [0], [0], [1], [0, 0, 1, 1], [], []>} : vector<16x32xbf16>, vector<32x256xbf16>, vector<16x256xf32> -> vector<16x256xf32>
      %16 = vector.extract_strided_slice %15 {offsets = [0, 0], sizes = [16, 128], strides = [1, 1]} : vector<16x256xf32> to vector<16x128xf32>
      %17 = vector.extract_strided_slice %15 {offsets = [0, 128], sizes = [16, 128], strides = [1, 1]} : vector<16x256xf32> to vector<16x128xf32>
      %cst_10 = arith.constant 0.000000e+00 : f32
      %18 = vector.broadcast %cst_10 : f32 to vector<16x128xf32>
      %19 = arith.subf %18, %16 : vector<16x128xf32>
      %20 = math.exp %19 : vector<16x128xf32>
      %cst_11 = arith.constant 1.000000e+00 : f32
      %21 = vector.broadcast %cst_11 : f32 to vector<16x128xf32>
      %22 = arith.addf %21, %20 : vector<16x128xf32>
      %23 = tpu.reciprocal %22 {approx = true} : vector<16x128xf32> -> vector<16x128xf32>
      %24 = arith.mulf %16, %23 : vector<16x128xf32>
      %25 = arith.mulf %24, %17 : vector<16x128xf32>
      %26 = arith.truncf %25 : vector<16x128xf32> to vector<16x128xbf16>
      %c0_12 = arith.constant 0 : index
      %c0_13 = arith.constant 0 : index
      %c0_14 = arith.constant 0 : index
      %27 = vector.load %arg6[%c0_12, %c0_13, %c0_14] : memref<1x128x32xbf16, #tpu.memory_space<vmem>>, vector<1x128x32xbf16>
      %28 = vector.shape_cast %27 : vector<1x128x32xbf16> to vector<128x32xbf16>
      %cst_15 = arith.constant dense<0.000000e+00> : vector<16x32xf32>
      %29 = tpu.matmul %26, %28, %cst_15 {dimension_numbers = #tpu.dot_dimension_numbers<[1], [0], [0], [1], [0, 0, 1, 1], [], []>} : vector<16x128xbf16>, vector<128x32xbf16>, vector<16x32xf32> -> vector<16x32xf32>
      %c0_16 = arith.constant 0 : index
      %c0_17 = arith.constant 0 : index
      %30 = vector.load %arg8[%c0_16, %c0_17] : memref<16x32xf32, #tpu.memory_space<vmem>>, vector<16x32xf32>
      %c0_18 = arith.constant 0 : index
      %c0_19 = arith.constant 0 : index
      %31 = vector.load %arg9[%c0_18, %c0_19] : memref<16x1xf32, #tpu.memory_space<vmem>>, vector<16x1xf32>
      %32 = vector.broadcast %31 : vector<16x1xf32> to vector<16x32xf32>
      %33 = arith.mulf %32, %29 : vector<16x32xf32>
      %34 = arith.addf %30, %33 : vector<16x32xf32>
      %c0_20 = arith.constant 0 : index
      %c0_21 = arith.constant 0 : index
      %35 = vector.load %arg8[%c0_20, %c0_21] : memref<16x32xf32, #tpu.memory_space<vmem>>, vector<16x32xf32>
      tpu.vector_store %arg8[%c0_20, %c0_21], %34 {strides = array<i32>} : memref<16x32xf32, #tpu.memory_space<vmem>>, vector<16x32xf32>,
    } else {
    }
    return
  }
  func.func @transform_0(%arg0: i32, %arg1: i32, %arg2: i32, %arg3: memref<6xi32, #tpu.memory_space<smem>>) -> (i32, i32) {
    %c0_i32 = arith.constant 0 : i32
    %c0_i32_0 = arith.constant 0 : i32
    return %arg0, %c0_i32 : i32, i32
  }
  func.func @transform_1(%arg0: i32, %arg1: i32, %arg2: i32, %arg3: memref<6xi32, #tpu.memory_space<smem>>) -> (i32, i32, i32) {
    %c1_i32 = arith.constant 1 : i32
    %0 = arith.addi %c1_i32, %arg1 : i32
    %1 = arith.index_cast %0 : i32 to index
    %2 = memref.load %arg3[%1] : memref<6xi32, #tpu.memory_space<smem>>
    %c0 = arith.constant 0 : index
    %3 = memref.load %arg3[%c0] : memref<6xi32, #tpu.memory_space<smem>>
    %4 = arith.cmpi slt, %arg1, %3 : i32
    %c0_i32 = arith.constant 0 : i32
    %5 = arith.select %4, %arg2, %c0_i32 : i32
    %c0_i32_0 = arith.constant 0 : i32
    %c0_i32_1 = arith.constant 0 : i32
    return %2, %c0_i32_0, %5 : i32, i32, i32
  }
  func.func @transform_2(%arg0: i32, %arg1: i32, %arg2: i32, %arg3: memref<6xi32, #tpu.memory_space<smem>>) -> (i32, i32, i32) {
    %c1_i32 = arith.constant 1 : i32
    %0 = arith.addi %c1_i32, %arg1 : i32
    %1 = arith.index_cast %0 : i32 to index
    %2 = memref.load %arg3[%1] : memref<6xi32, #tpu.memory_space<smem>>
    %c0 = arith.constant 0 : index
    %3 = memref.load %arg3[%c0] : memref<6xi32, #tpu.memory_space<smem>>
    %4 = arith.cmpi slt, %arg1, %3 : i32
    %c0_i32 = arith.constant 0 : i32
    %5 = arith.select %4, %arg2, %c0_i32 : i32
    %c0_i32_0 = arith.constant 0 : i32
    %c0_i32_1 = arith.constant 0 : i32
    return %2, %5, %c0_i32_0 : i32, i32, i32
  }
  func.func @transform_3(%arg0: i32, %arg1: i32, %arg2: i32, %arg3: memref<6xi32, #tpu.memory_space<smem>>) -> (i32, i32) {
    %c0_i32 = arith.constant 0 : i32
    %c0_i32_0 = arith.constant 0 : i32
    return %arg0, %c0_i32 : i32, i32
  }
  func.func @transform_4(%arg0: i32, %arg1: i32, %arg2: i32, %arg3: memref<6xi32, #tpu.memory_space<smem>>) -> (i32, i32) {
    %c0_i32 = arith.constant 0 : i32
    %c0_i32_0 = arith.constant 0 : i32
    return %arg0, %c0_i32 : i32, i32
  }
}

</mosaic_0001>

<llo_original>
// kernel: tpu_custom_call.1
$region0: #{tpu_custom_call.1}
  #allocation0 [shape = 'u32[]', space=smem, size = 0x4, offset = 0x4, fixed_abs, tag = 'smem constant byte address 0x4 - core index']
  #allocation1 [shape = 'u32[144,128]{1,0:T(1,128)}', space=vmem, size = 0x12000, scoped, tag = 'internal scratch']
  #allocation2 [shape = 'f32[16,1]{1,0:T(8,128)}', space=vmem, size = 0x2000, scoped, tag = 'scratch operand']
  #allocation3 [shape = 's32[1]{0}', space=sflag, size = 0x4, scoped, tag = 'scoped memory for tpu_custom_call.1']
  #allocation4 [shape = 'u8[512]{0}', space=smem, size = 0x200, scoped, tag = 'prefetched SMEM operand 0']
  %s0 = inlined_call_operand.vmem [shape: s32[6], index: 0, kind: input, shape index: {}]
  %s1 = inlined_call_operand.vmem [shape: bf16[16,32], index: 1, kind: input, shape index: {}]
  %s2 = inlined_call_operand.vmem [shape: bf16[5,32,256], index: 2, kind: input, shape index: {}]
  %s3 = inlined_call_operand.vmem [shape: bf16[5,128,32], index: 3, kind: input, shape index: {}]
  %s4 = inlined_call_operand.vmem [shape: f32[16,5], index: 4, kind: input, shape index: {}]
  %s5 = inlined_call_operand.hbm [shape: f32[16,32], index: 5, kind: output, shape index: {}]
  %s6 = sld [smem:[#allocation0]]
  $region61: #{tpu_custom_call.1} parent=0
    _
  %s8 = ssub.s32 1, %s6
  %s9 = scalar_select 0, %s8, %s6
  %s10 = sshll.u32 %s0, 4
  %s11 = int_to_ptr.vmem [resolvable:$true] %s10
  %13 = dma.vmem_to_smem %s11, 16, [#allocation4], [#allocation3]
  %14 = dma.done [#allocation3], 16
  %15 = sfence
  $region1: #{tpu_custom_call.1} parent=0
    #allocation5 [shape = 'u8[8192]{0}', space=vmem, size = 0x2000, scoped, tag = 'output window, operand 0, single buffered']
    #allocation6 [shape = 's32[2]{0}', space=sflag, size = 0x8, scoped, tag = 'scoped memory for tpu_custom_call.1']
    %16 = vsyncpa [#allocation6], 0
    loop: start=0, step=1, limit=7
    $region2: #{tpu_custom_call.1} parent=1 // loop_pre_header
      _
    $region3: #{tpu_custom_call.1} parent=1 // loop_header
      %s18 = sphi 0, %s22
      %p19 = scmp.ge.s32.totalorder %s18, 7
      %s25 = sphi 0, %s44
      %s26 = sphi 0, %s40
      %s27 = sphi 0, %s36
      %s28 = sphi 0, %s25
      %s29 = sphi 0, %s26
      %s30 = sphi 0, %s27
      %s31 = sphi 0, %s28
      %s32 = sphi 0, %s29
      %s33 = sphi 0, %s30
      %s47 = sphi 0, %s49
      %s50 = sphi 0, %s47
      %s51 = sphi 0, %s50
      %s67 = sphi 0, %s51
      %s85 = sphi 0, %s87
      %s88 = sphi 0, %s85
      %s89 = sphi 0, %s88
      %s105 = sphi 0, %s89
      %s123 = sphi 0, %s125
      %s126 = sphi 0, %s123
      %s127 = sphi 0, %s126
      %s143 = sphi 0, %s127
      %s149 = sphi 0, %s151
      %s152 = sphi 0, %s149
      %s153 = sphi 0, %s152
      %s169 = sphi 0, %s153
      %s175 = sphi 0, %s177
      %s178 = sphi 0, %s175
      %s179 = sphi 0, %s178
      %s195 = sphi 0, %s179
    $region4: #{tpu_custom_call.1} parent=1 // loop_header_branch
      %21 = sbr.rel (%p19) target = $region8
    $region5: #{tpu_custom_call.1} parent=1 // loop_body
      %s23 = ssub.s32 %s18, 1
      %s24 = ssub.s32 %s18, 2
      %s34 = sadd.s32 1, %s27
      %p35 = scmp.ge.s32.totalorder %s34, 1
      %s36 = scalar_select %p35, 0, %s34
      %s37 = sadd.s32 1, %s26
      %s38 = scalar_select %p35, %s37, %s26
      %p39 = scmp.ge.s32.totalorder %s38, 5
      %s40 = scalar_select %p39, 0, %s38
      %s41 = sadd.s32 1, %s25
      %s42 = scalar_select %p39, %s41, %s25
      %p43 = scmp.ge.s32.totalorder %s42, 1
      %s44 = scalar_select %p43, 0, %s42
      %s45 = ssub.s32 %s25, %s44
      %p46 = scmp.eq.s32.totalorder %s45, 0
      %s48 = sadd.s32 %s47, 1
      %s49 = scalar_select %p46, %s47, %s48
      %p52 = pneg %p46
      %p53 = scmp.eq.s32.totalorder %s18, 4
      %p54 = por %p52, %p53
      %p55 = scmp.ne.s32.totalorder %s47, %s50
      %p56 = scmp.eq.s32.totalorder %s18, 0
      %p57 = por %p55, %p56
      %p58 = scmp.ne.s32.totalorder %s47, %s50
      %p59 = scmp.eq.s32.totalorder %s23, 4
      %p60 = por %p58, %p59
      %p61 = scmp.ne.s32.totalorder %s50, %s51
      %p62 = scmp.eq.s32.totalorder %s23, 0
      %p63 = por %p61, %p62
      %p64 = scmp.ne.s32.totalorder %s50, %s51
      %p65 = scmp.eq.s32.totalorder %s24, 4
      %p66 = por %p64, %p65
      %p68 = scmp.ne.s32.totalorder %s51, %s67
      %p69 = scmp.eq.s32.totalorder %s24, 0
      %p70 = por %p68, %p69
      %s71 = sadd.s32 %s26, 1
      %s72 = sld [smem:[#allocation4 + %s71]]
      %s73 = sld [smem:[#allocation4]]
      %p74 = scmp.lt.s32.totalorder %s26, %s73
      %s75 = scalar_select %p74, %s27, 0
      %s76 = sadd.s32 %s40, 1
      %s77 = sld [smem:[#allocation4 + %s76]]
      %s78 = sld [smem:[#allocation4]]
      %p79 = scmp.lt.s32.totalorder %s40, %s78
      %s80 = scalar_select %p79, %s36, 0
      %s81 = ssub.s32 %s72, %s77
      %s82 = ssub.s32 %s75, %s80
      %s83 = sor.u32 %s81, %s82
      %p84 = scmp.eq.s32.totalorder %s83, 0
      %s86 = sadd.s32 %s85, 1
      %s87 = scalar_select %p84, %s85, %s86
      %p90 = pneg %p84
      %p91 = scmp.eq.s32.totalorder %s18, 4
      %p92 = por %p90, %p91
      %p93 = scmp.ne.s32.totalorder %s85, %s88
      %p94 = scmp.eq.s32.totalorder %s18, 0
      %p95 = por %p93, %p94
      %p96 = scmp.ne.s32.totalorder %s85, %s88
      %p97 = scmp.eq.s32.totalorder %s23, 4
      %p98 = por %p96, %p97
      %p99 = scmp.ne.s32.totalorder %s88, %s89
      %p100 = scmp.eq.s32.totalorder %s23, 0
      %p101 = por %p99, %p100
      %p102 = scmp.ne.s32.totalorder %s88, %s89
      %p103 = scmp.eq.s32.totalorder %s24, 4
      %p104 = por %p102, %p103
      %p106 = scmp.ne.s32.totalorder %s89, %s105
      %p107 = scmp.eq.s32.totalorder %s24, 0
      %p108 = por %p106, %p107
      %s109 = sadd.s32 %s26, 1
      %s110 = sld [smem:[#allocation4 + %s109]]
      %s111 = sld [smem:[#allocation4]]
      %p112 = scmp.lt.s32.totalorder %s26, %s111
      %s113 = scalar_select %p112, %s27, 0
      %s114 = sadd.s32 %s40, 1
      %s115 = sld [smem:[#allocation4 + %s114]]
      %s116 = sld [smem:[#allocation4]]
      %p117 = scmp.lt.s32.totalorder %s40, %s116
      %s118 = scalar_select %p117, %s36, 0
      %s119 = ssub.s32 %s110, %s115
      %s120 = ssub.s32 %s113, %s118
      %s121 = sor.u32 %s119, %s120
      %p122 = scmp.eq.s32.totalorder %s121, 0
      %s124 = sadd.s32 %s123, 1
      %s125 = scalar_select %p122, %s123, %s124
      %p128 = pneg %p122
      %p129 = scmp.eq.s32.totalorder %s18, 4
      %p130 = por %p128, %p129
      %p131 = scmp.ne.s32.totalorder %s123, %s126
      %p132 = scmp.eq.s32.totalorder %s18, 0
      %p133 = por %p131, %p132
      %p134 = scmp.ne.s32.totalorder %s123, %s126
      %p135 = scmp.eq.s32.totalorder %s23, 4
      %p136 = por %p134, %p135
      %p137 = scmp.ne.s32.totalorder %s126, %s127
      %p138 = scmp.eq.s32.totalorder %s23, 0
      %p139 = por %p137, %p138
      %p140 = scmp.ne.s32.totalorder %s126, %s127
      %p141 = scmp.eq.s32.totalorder %s24, 4
      %p142 = por %p140, %p141
      %p144 = scmp.ne.s32.totalorder %s127, %s143
      %p145 = scmp.eq.s32.totalorder %s24, 0
      %p146 = por %p144, %p145
      %s147 = ssub.s32 %s25, %s44
      %p148 = scmp.eq.s32.totalorder %s147, 0
      %s150 = sadd.s32 %s149, 1
      %s151 = scalar_select %p148, %s149, %s150
      %p154 = pneg %p148
      %p155 = scmp.eq.s32.totalorder %s18, 4
      %p156 = por %p154, %p155
      %p157 = scmp.ne.s32.totalorder %s149, %s152
      %p158 = scmp.eq.s32.totalorder %s18, 0
      %p159 = por %p157, %p158
      %p160 = scmp.ne.s32.totalorder %s149, %s152
      %p161 = scmp.eq.s32.totalorder %s23, 4
      %p162 = por %p160, %p161
      %p163 = scmp.ne.s32.totalorder %s152, %s153
      %p164 = scmp.eq.s32.totalorder %s23, 0
      %p165 = por %p163, %p164
      %p166 = scmp.ne.s32.totalorder %s152, %s153
      %p167 = scmp.eq.s32.totalorder %s24, 4
      %p168 = por %p166, %p167
      %p170 = scmp.ne.s32.totalorder %s153, %s169
      %p171 = scmp.eq.s32.totalorder %s24, 0
      %p172 = por %p170, %p171
      %s173 = ssub.s32 %s25, %s44
      %p174 = scmp.eq.s32.totalorder %s173, 0
      %s176 = sadd.s32 %s175, 1
      %s177 = scalar_select %p174, %s175, %s176
      %p180 = pneg %p174
      %p181 = scmp.eq.s32.totalorder %s18, 4
      %p182 = por %p180, %p181
      %p183 = scmp.ne.s32.totalorder %s175, %s178
      %p184 = scmp.eq.s32.totalorder %s18, 0
      %p185 = por %p183, %p184
      %p186 = scmp.ne.s32.totalorder %s175, %s178
      %p187 = scmp.eq.s32.totalorder %s23, 4
      %p188 = por %p186, %p187
      %p189 = scmp.ne.s32.totalorder %s178, %s179
      %p190 = scmp.eq.s32.totalorder %s23, 0
      %p191 = por %p189, %p190
      %p192 = scmp.ne.s32.totalorder %s178, %s179
      %p193 = scmp.eq.s32.totalorder %s24, 4
      %p194 = por %p192, %p193
      %p196 = scmp.ne.s32.totalorder %s179, %s195
      %p197 = scmp.eq.s32.totalorder %s24, 0
      %p198 = por %p196, %p197
      %p199 = scmp.le.s32.totalorder 1, %s18
      %p200 = scmp.lt.s32.totalorder %s18, 6
      %p201 = pnand %p199, %p200
      %p202 = pneg %p201
      // Predicated region
      $region9: #{tpu_custom_call.1} parent=5 // pred_check
        _
      $region10: #{tpu_custom_call.1} parent=5 // pred_check_branch
        %204 = sbr.rel (%p201) target = $region12
      $region11: #{tpu_custom_call.1} parent=5 // pred_region
        %s205 = ssub.s32 %s18, 1
        // Predicated region
        $region13: #{tpu_custom_call.1} parent=11 // pred_check
          %p206 = pneg %p63
        $region14: #{tpu_custom_call.1} parent=11 // pred_check_branch
          %208 = sbr.rel (%p206) target = $region16
        $region15: #{tpu_custom_call.1} parent=11 // pred_region
          %s209 = smul.u32 2, %s28
          %p210 = scmp.lt.s32.totalorder %s209, 1
          %s211 = scalar_select %p210, %s209, 1
          %s212 = smul.addr %s211, 4
          %s213 = scalar_lea.vmem %s1, %s212
          %s214 = smul.u32 2, %s28
        $region16: #{tpu_custom_call.1} parent=11 // pred_fallthru
          _
        // Predicated region
        $region17: #{tpu_custom_call.1} parent=11 // pred_check
          %p215 = pneg %p165
        $region18: #{tpu_custom_call.1} parent=11 // pred_check_branch
          %217 = sbr.rel (%p215) target = $region20
        $region19: #{tpu_custom_call.1} parent=11 // pred_region
          %s218 = smul.u32 2, %s28
          %p219 = scmp.lt.s32.totalorder %s218, 1
          %s220 = scalar_select %p219, %s218, 1
          %s221 = smul.addr %s220, 8
          %s222 = scalar_lea.vmem %s4, %s221
          %s223 = smul.u32 2, %s28
        $region20: #{tpu_custom_call.1} parent=11 // pred_fallthru
          _
      $region12: #{tpu_custom_call.1} parent=5 // pred_fallthru
        _
      %p224 = scmp.lt.s32.totalorder %s18, 5
      // Predicated region
      $region21: #{tpu_custom_call.1} parent=5 // pred_check
        %p225 = pneg %p224
      $region22: #{tpu_custom_call.1} parent=5 // pred_check_branch
        %227 = sbr.rel (%p225) target = $region24
      $region23: #{tpu_custom_call.1} parent=5 // pred_region
        // Predicated region
        $region25: #{tpu_custom_call.1} parent=23 // pred_check
          %p228 = pneg %p95
        $region26: #{tpu_custom_call.1} parent=23 // pred_check_branch
          %230 = sbr.rel (%p228) target = $region28
        $region27: #{tpu_custom_call.1} parent=23 // pred_region
          %s231 = sadd.s32 %s26, 1
          %s232 = sld [smem:[#allocation4 + %s231]]
          %s233 = sld [smem:[#allocation4]]
          %p234 = scmp.lt.s32.totalorder %s26, %s233
          %s235 = scalar_select %p234, %s27, 0
          %s236 = smul.u32 2, %s235
          %p237 = scmp.lt.s32.totalorder %s232, 4
          %s238 = scalar_select %p237, %s232, 4
          %p239 = scmp.lt.s32.totalorder %s236, 1
          %s240 = scalar_select %p239, %s236, 1
          %s241 = smul.addr %s238, 8
          %s242 = sadd.s32 %s240, %s241
          %s243 = smul.addr %s242, 4
          %s244 = scalar_lea.vmem %s2, %s243
          %s245 = sadd.s32 %s26, 1
          %s246 = sld [smem:[#allocation4 + %s245]]
          %s247 = sld [smem:[#allocation4]]
          %p248 = scmp.lt.s32.totalorder %s26, %s247
          %s249 = scalar_select %p248, %s27, 0
          %s250 = smul.u32 2, %s249
        $region28: #{tpu_custom_call.1} parent=23 // pred_fallthru
          _
        // Predicated region
        $region29: #{tpu_custom_call.1} parent=23 // pred_check
          %p251 = pneg %p133
        $region30: #{tpu_custom_call.1} parent=23 // pred_check_branch
          %253 = sbr.rel (%p251) target = $region32
        $region31: #{tpu_custom_call.1} parent=23 // pred_region
          %s254 = sadd.s32 %s26, 1
          %s255 = sld [smem:[#allocation4 + %s254]]
          %s256 = sld [smem:[#allocation4]]
          %p257 = scmp.lt.s32.totalorder %s26, %s256
          %s258 = scalar_select %p257, %s27, 0
          %s259 = smul.u32 16, %s258
          %p260 = scmp.lt.s32.totalorder %s255, 4
          %s261 = scalar_select %p260, %s255, 4
          %p262 = scmp.lt.s32.totalorder %s259, 15
          %s263 = scalar_select %p262, %s259, 15
          %s264 = smul.addr %s261, 16
          %s265 = sadd.s32 %s263, %s264
          %s266 = smul.addr %s265, 4
          %s267 = scalar_lea.vmem %s3, %s266
          %s268 = sadd.s32 %s26, 1
          %s269 = sld [smem:[#allocation4 + %s268]]
          %s270 = sld [smem:[#allocation4]]
          %p271 = scmp.lt.s32.totalorder %s26, %s270
          %s272 = scalar_select %p271, %s27, 0
          %s273 = smul.u32 16, %s272
        $region32: #{tpu_custom_call.1} parent=23 // pred_fallthru
          _
      $region24: #{tpu_custom_call.1} parent=5 // pred_fallthru
        _
      %p274 = scmp.le.s32.totalorder 1, %s18
      %p275 = scmp.lt.s32.totalorder %s18, 6
      %p276 = pnand %p274, %p275
      %p277 = pneg %p276
      // Predicated region
      $region33: #{tpu_custom_call.1} parent=5 // pred_check
        _
      $region34: #{tpu_custom_call.1} parent=5 // pred_check_branch
        %279 = sbr.rel (%p276) target = $region36
      $region35: #{tpu_custom_call.1} parent=5 // pred_region
        %s280 = ssub.s32 %s18, 1
        %s281 = smul.u32 2, %s28
        %p282 = scmp.lt.s32.totalorder %s281, 1
        %s283 = scalar_select %p282, %s281, 1
        %s284 = smul.addr %s283, 4
        %s285 = scalar_lea.vmem %s1, %s284
        %p286 = pneg %p63
        %p287 = pneg %p60
        %s288 = sadd.s32 %s29, 1
        %s289 = sld [smem:[#allocation4 + %s288]]
        %s290 = sld [smem:[#allocation4]]
        %p291 = scmp.lt.s32.totalorder %s29, %s290
        %s292 = scalar_select %p291, %s30, 0
        %s293 = smul.u32 2, %s292
        %p294 = scmp.lt.s32.totalorder %s289, 4
        %s295 = scalar_select %p294, %s289, 4
        %p296 = scmp.lt.s32.totalorder %s293, 1
        %s297 = scalar_select %p296, %s293, 1
        %s298 = smul.addr %s295, 8
        %s299 = sadd.s32 %s297, %s298
        %s300 = smul.addr %s299, 4
        %s301 = scalar_lea.vmem %s2, %s300
        %p302 = pneg %p101
        %p303 = pneg %p98
        %s304 = sadd.s32 %s29, 1
        %s305 = sld [smem:[#allocation4 + %s304]]
        %s306 = sld [smem:[#allocation4]]
        %p307 = scmp.lt.s32.totalorder %s29, %s306
        %s308 = scalar_select %p307, %s30, 0
        %s309 = smul.u32 16, %s308
        %p310 = scmp.lt.s32.totalorder %s305, 4
        %s311 = scalar_select %p310, %s305, 4
        %p312 = scmp.lt.s32.totalorder %s309, 15
        %s313 = scalar_select %p312, %s309, 15
        %s314 = smul.addr %s311, 16
        %s315 = sadd.s32 %s313, %s314
        %s316 = smul.addr %s315, 4
        %s317 = scalar_lea.vmem %s3, %s316
        %p318 = pneg %p139
        %p319 = pneg %p136
        %s320 = smul.u32 2, %s28
        %p321 = scmp.lt.s32.totalorder %s320, 1
        %s322 = scalar_select %p321, %s320, 1
        %s323 = smul.addr %s322, 8
        %s324 = scalar_lea.vmem %s4, %s323
        %p325 = pneg %p165
        %p326 = pneg %p162
        %p327 = pneg %p191
        %p328 = pneg %p188
        %s329 = smul.u32 2, %s28
        %p330 = scmp.lt.s32.totalorder %s329, 1
        %s331 = scalar_select %p330, %s329, 1
        %s332 = smul.addr %s331, 4
        %s333 = scalar_lea.vmem %s1, %s332
        %s334 = smul.u32 2, %s28
        %s335 = sadd.s32 %s29, 1
        %s336 = sld [smem:[#allocation4 + %s335]]
        %s337 = sld [smem:[#allocation4]]
        %p338 = scmp.lt.s32.totalorder %s29, %s337
        %s339 = scalar_select %p338, %s30, 0
        %s340 = smul.u32 2, %s339
        %p341 = scmp.lt.s32.totalorder %s336, 4
        %s342 = scalar_select %p341, %s336, 4
        %p343 = scmp.lt.s32.totalorder %s340, 1
        %s344 = scalar_select %p343, %s340, 1
        %s345 = smul.addr %s342, 8
        %s346 = sadd.s32 %s344, %s345
        %s347 = smul.addr %s346, 4
        %s348 = scalar_lea.vmem %s2, %s347
        %s349 = sadd.s32 %s29, 1
        %s350 = sld [smem:[#allocation4 + %s349]]
        %s351 = sld [smem:[#allocation4]]
        %p352 = scmp.lt.s32.totalorder %s29, %s351
        %s353 = scalar_select %p352, %s30, 0
        %s354 = smul.u32 2, %s353
        %s355 = sadd.s32 %s29, 1
        %s356 = sld [smem:[#allocation4 + %s355]]
        %s357 = sld [smem:[#allocation4]]
        %p358 = scmp.lt.s32.totalorder %s29, %s357
        %s359 = scalar_select %p358, %s30, 0
        %s360 = smul.u32 16, %s359
        %p361 = scmp.lt.s32.totalorder %s356, 4
        %s362 = scalar_select %p361, %s356, 4
        %p363 = scmp.lt.s32.totalorder %s360, 15
        %s364 = scalar_select %p363, %s360, 15
        %s365 = smul.addr %s362, 16
        %s366 = sadd.s32 %s364, %s365
        %s367 = smul.addr %s366, 4
        %s368 = scalar_lea.vmem %s3, %s367
        %s369 = sadd.s32 %s29, 1
        %s370 = sld [smem:[#allocation4 + %s369]]
        %s371 = sld [smem:[#allocation4]]
        %p372 = scmp.lt.s32.totalorder %s29, %s371
        %s373 = scalar_select %p372, %s30, 0
        %s374 = smul.u32 16, %s373
        %s375 = smul.u32 2, %s28
        %p376 = scmp.lt.s32.totalorder %s375, 1
        %s377 = scalar_select %p376, %s375, 1
        %s378 = smul.addr %s377, 8
        %s379 = scalar_lea.vmem %s4, %s378
        %s380 = smul.u32 2, %s28
        %s381 = smul.u32 2, %s28
        %s383 = sld [smem:[#allocation4]]
        %p384 = scmp.eq.s32.totalorder %s29, 0
        %p385 = scmp.eq.s32.totalorder %s30, 0
        %p386 = pnand %p384, %p385
        %p387 = pneg %p386
        // Predicated region
        $region37: #{tpu_custom_call.1} parent=35 // pred_check
          _
        $region38: #{tpu_custom_call.1} parent=35 // pred_check_branch
          %389 = sbr.rel (%p386) target = $region40
        $region39: #{tpu_custom_call.1} parent=35 // pred_region
          %vm390 = vcmask 261120
          %391 = vst.msk [vmem:[#allocation5] sm:$0xff] %vm390, 0.0
          %392 = vst.msk [vmem:[#allocation5 + $0x8] sm:$0xff] %vm390, 0.0
        $region40: #{tpu_custom_call.1} parent=35 // pred_fallthru
          _
        %p393 = scmp.lt.s32.totalorder %s29, %s383
        // Predicated region
        $region41: #{tpu_custom_call.1} parent=35 // pred_check
          %p394 = pneg %p393
        $region42: #{tpu_custom_call.1} parent=35 // pred_check_branch
          %396 = sbr.rel (%p394) target = $region44
        $region43: #{tpu_custom_call.1} parent=35 // pred_region
          // Predicated region
          $region45: #{tpu_custom_call.1} parent=43 // pred_check
            %p397 = pneg %p385
          $region46: #{tpu_custom_call.1} parent=43 // pred_check_branch
            %399 = sbr.rel (%p397) target = $region48
          $region47: #{tpu_custom_call.1} parent=43 // pred_region
            %v400 = vlaneseq
            %v401 = vand.u32 %v400, 127
            %v402 = vstv %s29
            %vm403 = vcmp.eq.s32.totalorder %v401, %v402
            %v404 = vld [vmem:[%s379] sm:$0xff]
            %v405 = vld [vmem:[%s379 + $0x8] sm:$0xff]
            %v406 = vsel %vm403, %v404, 0.0
            %v407 = vsel %vm403, %v405, 0.0
            %vm408 = vcmask 39936
            %v409 = vsel %vm408, %v406, 0.0
            %410 = vadd.xlane.f32.xlu0 %v409
            %v411 = vpop.xlane.xlu0 %410
            %v412 = vsel %vm408, %v407, 0.0
            %413 = vadd.xlane.f32.xlu0 %v412
            %v414 = vpop.xlane.xlu0 %413
            %vm415 = vcmask 7168
            %416 = vst.msk [vmem:[#allocation2] sm:$0xff] %vm415, %v411
            %417 = vst.msk [vmem:[#allocation2 + $0x8] sm:$0xff] %vm415, %v414
          $region48: #{tpu_custom_call.1} parent=43 // pred_fallthru
            _
          %v418 = vld [vmem:[%s333] sm:$0xf]
          %v419 = vld [vmem:[%s333 + $0x4] sm:$0xf]
          %v420 = vld [vmem:[%s348] sm:$0xff]
          %v421 = vld [vmem:[%s348 + $0x8] sm:$0xff]
          %v422 = vld [vmem:[%s348 + $0x10] sm:$0xff]
          %v423 = vld [vmem:[%s348 + $0x18] sm:$0xff]
          %v426 = vunpack.c.l.b16 %v418
          %v427 = vunpack.c.l.b16 %v419
          %v428 = vpack.c.b16 %v427, %v426
          %v433 = vunpack.c.l.b16 %v420
          %v434 = vunpack.c.h.b16 %v420
          %v435 = vunpack.c.l.b16 %v421
          %v436 = vunpack.c.h.b16 %v421
          %v437 = vunpack.c.l.b16 %v422
          %v438 = vunpack.c.h.b16 %v422
          %v439 = vunpack.c.l.b16 %v423
          %v440 = vunpack.c.h.b16 %v423
          %v441 = vpack.c.b16 %v435, %v433
          %v442 = vpack.c.b16 %v436, %v434
          %v443 = vpack.c.b16 %v439, %v437
          %v444 = vpack.c.b16 %v440, %v438
          %vm449 = vcmask 261120
          %v451 = vsel %vm449, %v428, 0
          %453 = vmatprep.subr.bf16.mxu0 %v442
          %454 = vmatpush1.bf16.msra.mxu0 %v441
          %455 = vmatprep.subr.bf16.mxu0 %v444
          %456 = vmatpush1.bf16.msra.mxu0 %v443
          %457 = vmatprep.subr.bf16.mxu0 0
          %458 = vmatpush1.bf16.msra.mxu0 0
          %459 = vmatprep.subr.bf16.mxu0 0
          %460 = vmatpush1.bf16.msra.mxu0 0
          %461 = vmatprep.subr.bf16.mxu0 0
          %462 = vmatpush1.bf16.msra.mxu0 0
          %463 = vmatprep.subr.bf16.mxu0 0
          %464 = vmatpush1.bf16.msra.mxu0 0
          %465 = vmatprep.subr.bf16.mxu0 0
          %466 = vmatpush1.bf16.msra.mxu0 0
          %467 = vmatprep.subr.bf16.mxu0 0
          %468 = vmatpush1.bf16.msra.mxu0 0
          %469 = vmatprep.subr.bf16.mxu0 0
          %470 = vmatpush1.bf16.msra.mxu0 0
          %471 = vmatprep.subr.bf16.mxu0 0
          %472 = vmatpush1.bf16.msra.mxu0 0
          %473 = vmatprep.subr.bf16.mxu0 0
          %474 = vmatpush1.bf16.msra.mxu0 0
          %475 = vmatprep.subr.bf16.mxu0 0
          %476 = vmatpush1.bf16.msra.mxu0 0
          %477 = vmatprep.subr.bf16.mxu0 0
          %478 = vmatpush1.bf16.msra.mxu0 0
          %479 = vmatprep.subr.bf16.mxu0 0
          %480 = vmatpush1.bf16.msra.mxu0 0
          %481 = vmatprep.subr.bf16.mxu0 0
          %482 = vmatpush1.bf16.msra.mxu0 0
          %483 = vmatprep.subr.bf16.mxu0 0
          %484 = vmatpush1.bf16.msra.mxu0 0
          %485 = vmatprep.mubr.bf16.mxu0 0
          %486 = vmatmul.mubr.bf16.gmra.mrb[0].mxu0 %v451
          %v487 = vpop.f32.mrb[0].mxu0
          %v488 = vadd.f32 0.0, %v487
          %v489 = vpop.f32.mrb[0].mxu0
          %v490 = vadd.f32 0.0, %v489
          %v491 = vpop.f32.mrb[0].mxu0
          %v492 = vadd.f32 0.0, %v491
          %v493 = vpop.f32.mrb[0].mxu0
          %v494 = vadd.f32 0.0, %v493
          %495 = vdwg.mxu0
          %v496 = vsub.f32 0.0, %v488
          %v497 = vsub.f32 0.0, %v492
          %v498 = vmul.f32 %v496, 1.442695
          %v499 = vpow.pop %v498
          %v500 = vmul.f32 %v497, 1.442695
          %v501 = vpow.pop %v500
          %v502 = vadd.f32 %v499, 1.0
          %v503 = vadd.f32 %v501, 1.0
          %v504 = vrcp.pop %v502
          %v505 = vrcp.pop %v503
          %v506 = vmul.f32 %v488, %v504
          %v507 = vmul.f32 %v492, %v505
          %v508 = vmul.f32 %v506, %v490
          %v509 = vmul.f32 %v507, %v494
          %v510 = vpack.c.bf16 %v509, %v508
          %v511 = vld [vmem:[%s368] sm:$0xf]
          %v512 = vld [vmem:[%s368 + $0x4] sm:$0xf]
          %v513 = vld [vmem:[%s368 + $0x8] sm:$0xf]
          %v514 = vld [vmem:[%s368 + $0xc] sm:$0xf]
          %v515 = vld [vmem:[%s368 + $0x10] sm:$0xf]
          %v516 = vld [vmem:[%s368 + $0x14] sm:$0xf]
          %v517 = vld [vmem:[%s368 + $0x18] sm:$0xf]
          %v518 = vld [vmem:[%s368 + $0x1c] sm:$0xf]
          %v519 = vld [vmem:[%s368 + $0x20] sm:$0xf]
          %v520 = vld [vmem:[%s368 + $0x24] sm:$0xf]
          %v521 = vld [vmem:[%s368 + $0x28] sm:$0xf]
          %v522 = vld [vmem:[%s368 + $0x2c] sm:$0xf]
          %v523 = vld [vmem:[%s368 + $0x30] sm:$0xf]
          %v524 = vld [vmem:[%s368 + $0x34] sm:$0xf]
          %v525 = vld [vmem:[%s368 + $0x38] sm:$0xf]
          %v526 = vld [vmem:[%s368 + $0x3c] sm:$0xf]
          %v543 = vunpack.c.l.b16 %v511
          %v544 = vunpack.c.l.b16 %v512
          %v545 = vunpack.c.l.b16 %v513
          %v546 = vunpack.c.l.b16 %v514
          %v547 = vunpack.c.l.b16 %v515
          %v548 = vunpack.c.l.b16 %v516
          %v549 = vunpack.c.l.b16 %v517
          %v550 = vunpack.c.l.b16 %v518
          %v551 = vunpack.c.l.b16 %v519
          %v552 = vunpack.c.l.b16 %v520
          %v553 = vunpack.c.l.b16 %v521
          %v554 = vunpack.c.l.b16 %v522
          %v555 = vunpack.c.l.b16 %v523
          %v556 = vunpack.c.l.b16 %v524
          %v557 = vunpack.c.l.b16 %v525
          %v558 = vunpack.c.l.b16 %v526
          %v559 = vpack.c.b16 %v544, %v543
          %v560 = vpack.c.b16 %v546, %v545
          %v561 = vpack.c.b16 %v548, %v547
          %v562 = vpack.c.b16 %v550, %v549
          %v563 = vpack.c.b16 %v552, %v551
          %v564 = vpack.c.b16 %v554, %v553
          %v565 = vpack.c.b16 %v556, %v555
          %v566 = vpack.c.b16 %v558, %v557
          %575 = vmatprep.subr.bf16.mxu0 0
          %576 = vmatpush1.bf16.msra.mxu0 %v559
          %577 = vmatprep.subr.bf16.mxu0 0
          %578 = vmatpush1.bf16.msra.mxu0 %v560
          %579 = vmatprep.subr.bf16.mxu0 0
          %580 = vmatpush1.bf16.msra.mxu0 %v561
          %581 = vmatprep.subr.bf16.mxu0 0
          %582 = vmatpush1.bf16.msra.mxu0 %v562
          %583 = vmatprep.subr.bf16.mxu0 0
          %584 = vmatpush1.bf16.msra.mxu0 %v563
          %585 = vmatprep.subr.bf16.mxu0 0
          %586 = vmatpush1.bf16.msra.mxu0 %v564
          %587 = vmatprep.subr.bf16.mxu0 0
          %588 = vmatpush1.bf16.msra.mxu0 %v565
          %589 = vmatprep.subr.bf16.mxu0 0
          %590 = vmatpush1.bf16.msra.mxu0 %v566
          %591 = vmatprep.subr.bf16.mxu0 0
          %592 = vmatpush1.bf16.msra.mxu0 0
          %593 = vmatprep.subr.bf16.mxu0 0
          %594 = vmatpush1.bf16.msra.mxu0 0
          %595 = vmatprep.subr.bf16.mxu0 0
          %596 = vmatpush1.bf16.msra.mxu0 0
          %597 = vmatprep.subr.bf16.mxu0 0
          %598 = vmatpush1.bf16.msra.mxu0 0
          %599 = vmatprep.subr.bf16.mxu0 0
          %600 = vmatpush1.bf16.msra.mxu0 0
          %601 = vmatprep.subr.bf16.mxu0 0
          %602 = vmatpush1.bf16.msra.mxu0 0
          %603 = vmatprep.subr.bf16.mxu0 0
          %604 = vmatpush1.bf16.msra.mxu0 0
          %605 = vmatprep.subr.bf16.mxu0 0
          %606 = vmatpush1.bf16.msra.mxu0 0
          %607 = vmatprep.mubr.bf16.mxu0 0
          %608 = vmatmul.mubr.bf16.gmra.mrb[0].mxu0 %v510
          %v609 = vpop.f32.mrb[0].mxu0
          %v610 = vadd.f32 0.0, %v609
          %v611 = vpop.f32.mrb[0].mxu0
          %v612 = vpop.f32.mrb[0].mxu0
          %v613 = vadd.f32 0.0, %v612
          %v614 = vpop.f32.mrb[0].mxu0
          %615 = vdwg.mxu0
          %v616 = vld [vmem:[#allocation5] sm:$0xff]
          %v617 = vld [vmem:[#allocation5 + $0x8] sm:$0xff]
          %v618 = vld [vmem:[#allocation2] sm:$0xff]
          %v619 = vld [vmem:[#allocation2 + $0x8] sm:$0xff]
          %621 = vset.pattern.permute.xlu0 0
          %622 = vperm.xlu0 %621, %v618
          %v623 = vpop.permute.xlu0 %622
          %626 = vset.pattern.permute.xlu0 0
          %627 = vperm.xlu0 %626, %v619
          %v628 = vpop.permute.xlu0 %627
          %v630 = vmul.f32 %v623, %v610
          %v631 = vmul.f32 %v628, %v613
          %v632 = vadd.f32 %v616, %v630
          %v633 = vadd.f32 %v617, %v631
          %634 = vst.msk [vmem:[#allocation5] sm:$0xff] %vm449, %v632
          %635 = vst.msk [vmem:[#allocation5 + $0x8] sm:$0xff] %vm449, %v633
        $region44: #{tpu_custom_call.1} parent=35 // pred_fallthru
          _
        // Predicated region
        $region49: #{tpu_custom_call.1} parent=35 // pred_check
          %p636 = pneg %p188
        $region50: #{tpu_custom_call.1} parent=35 // pred_check_branch
          %638 = sbr.rel (%p636) target = $region52
        $region51: #{tpu_custom_call.1} parent=35 // pred_region
          %s639 = smul.u32 2, %s28
          %s641 = ssub.s32 256, 256
          %642 = vsyncadd [#allocation6], %s641
          %s643 = smul.addr %s639, 128
          %s644 = scalar_lea.hbm %s5, %s643
          %s645 = sshll.u32 [#allocation5], 4
          %s646 = int_to_ptr.vmem [resolvable:$true] %s645
          %651 = dma.vmem_to_hbm [thread:$0]  %s646, 256, %s644, [#allocation6], 128, 128, 8
        $region52: #{tpu_custom_call.1} parent=35 // pred_fallthru
          _
        // Predicated region
        $region53: #{tpu_custom_call.1} parent=35 // pred_check
          %p652 = pneg %p188
        $region54: #{tpu_custom_call.1} parent=35 // pred_check_branch
          %654 = sbr.rel (%p652) target = $region56
        $region55: #{tpu_custom_call.1} parent=35 // pred_region
          %655 = dma.done [#allocation6], 256
        $region56: #{tpu_custom_call.1} parent=35 // pred_fallthru
          _
      $region36: #{tpu_custom_call.1} parent=5 // pred_fallthru
        _
      %p656 = scmp.le.s32.totalorder 2, %s18
      // Predicated region
      $region57: #{tpu_custom_call.1} parent=5 // pred_check
        %p657 = pneg %p656
      $region58: #{tpu_custom_call.1} parent=5 // pred_check_branch
        %659 = sbr.rel (%p657) target = $region60
      $region59: #{tpu_custom_call.1} parent=5 // pred_region
        %s660 = ssub.s32 %s18, 2
      $region60: #{tpu_custom_call.1} parent=5 // pred_fallthru
        _
    $region6: #{tpu_custom_call.1} parent=1 // loop_footer
      %s22 = sadd.s32 1, %s18
    $region7: #{tpu_custom_call.1} parent=1 // loop_footer_branch
      %17 = sbr.rel target = $region3
    $region8: #{tpu_custom_call.1} parent=1 // loop_exit
      _
    %661 = vsyncpa [#allocation6], 1
    %s662 = scalar_lea.sflag [#allocation6], 1
    %663 = vsyncpa %s662, 1

</llo_original>
